<compile_context>
chip_gen: v7x
topology: tpu7x:2x2x1
jax: 0.10.0
libtpu: 0.0.40
codegen_flags: <defaults>
</compile_context>

<pallas_src>
import math

import jax
import jax.numpy as jnp
from jax.experimental import pallas as pl
from jax.experimental.pallas import tpu as pltpu


LANE = 128                       # TPU lane width (last block dim)
SUB = 8                          # sublane granularity (2nd-to-last block dim)
VMEM_BUDGET = 16 * 1024 * 1024   # bytes for the double-buffered in+out blocks


def _round_up(x, m):
    return ((x + m - 1) // m) * m


def _tile_pixels(s_total, ci, co):
    """Pick (S_blk, num_tiles) for the pixel-row axis (rows of 128 pixels)."""
    per_row_bytes = (ci + co) * LANE * 4 * 2          # f32, double-buffered
    s_max = max(SUB, (VMEM_BUDGET // per_row_bytes) // SUB * SUB)
    if s_total <= s_max:
        return s_total, 1                              # block == full array dim
    num = -(-s_total // s_max)
    s_blk = _round_up(-(-s_total // num), SUB)         # balanced, multiple of 8
    return s_blk, num


# -----------------------------------------------------------------------------
# Pallas kernel: channel-major 1x1 conv over the pixel-shuffled image (VPU only)
# -----------------------------------------------------------------------------
def _shuffle_conv1x1_kernel(x_ref, w_ref, o_ref):
    """x_ref: (1, Ci, S_blk, 128) VMEM  -- per-channel full-vreg pixel slabs
       w_ref: (Co, Ci)            SMEM  -- 1x1-conv weights as scalars
       o_ref: (1, Co, S_blk, 128) VMEM"""
    ci = x_ref.shape[1]
    co = o_ref.shape[1]
    xs = [x_ref[0, c] for c in range(ci)]              # (S_blk, 128) f32 slabs
    for o in range(co):                                # static unroll: Co*Ci FMA
        acc = xs[0] * w_ref[o, 0]
        for c in range(1, ci):
            acc = acc + xs[c] * w_ref[o, c]
        o_ref[0, o] = acc.astype(o_ref.dtype)


def shuffle_conv1x1(x_cm, w):
    """x_cm: (B, Ci, Ms) channel-major pixel-shuffled image (pixels contiguous).
       w   : (Co, Ci) 1x1-conv weight.  Returns (B, Co, Ms)."""
    B, Ci, Ms = x_cm.shape
    Co = w.shape[0]

    s_total = -(-Ms // LANE)
    s_blk, num_tiles = _tile_pixels(s_total, Ci, Co)
    s_pad = s_blk * num_tiles
    ms_pad = s_pad * LANE
    if ms_pad != Ms:
        x_cm = jnp.pad(x_cm, ((0, 0), (0, 0), (0, ms_pad - Ms)))
    x4 = x_cm.reshape(B, Ci, s_pad, LANE)              # free reshape (row-major)

    flops = 2 * B * ms_pad * Ci * Co
    bytes_accessed = (B * Ci * ms_pad + B * Co * ms_pad + Co * Ci) * 4

    out = pl.pallas_call(
        _shuffle_conv1x1_kernel,
        out_shape=jax.ShapeDtypeStruct((B, Co, s_pad, LANE), x_cm.dtype),
        grid=(B, num_tiles),
        in_specs=[
            # last two dims (s_blk, 128): s_blk is a multiple of 8 or the full dim
            pl.BlockSpec((1, Ci, s_blk, LANE), lambda b, s: (b, 0, s, 0)),
            # Co*Ci weights live in SMEM; read as scalars inside the kernel
            pl.BlockSpec(memory_space=pltpu.MemorySpace.SMEM),
        ],
        out_specs=pl.BlockSpec((1, Co, s_blk, LANE), lambda b, s: (b, 0, s, 0)),
        compiler_params=pltpu.CompilerParams(
            dimension_semantics=("parallel", "parallel")),
        cost_estimate=pl.CostEstimate(
            flops=flops, transcendentals=0, bytes_accessed=bytes_accessed),
    )(x4, w)

    out = out.reshape(B, Co, ms_pad)
    if ms_pad != Ms:
        out = out[:, :, :Ms]
    return out


# -----------------------------------------------------------------------------
# Module
# -----------------------------------------------------------------------------
class PixelShufflePallas:
    def __init__(self, dim, up_scale=2, bias=False, seed=42):
        assert not bias, "module is constructed with bias=False"
        assert dim % (up_scale * up_scale) == 0
        self.dim = dim
        self.up_scale = up_scale
        c_in = dim // (up_scale ** 2)
        # alpha exists in the torch module but is unused in forward.
        self.alpha = jnp.ones((1,), jnp.float32)
        # Deterministic init mimicking torch Conv2d kaiming-uniform bound for a
        # 1x1 kernel: bound = 1/sqrt(fan_in) = 1/sqrt(c_in). Stored as (3, c_in).
        bound = 1.0 / math.sqrt(c_in)
        self.w = jax.random.uniform(
            jax.random.PRNGKey(seed), (3, c_in), jnp.float32, -bound, bound)

    def __call__(self, x_tokens):
        r = self.up_scale
        B, N, C = x_tokens.shape
        H = W = int(math.isqrt(N))
        assert H * W == N, "tokens must form a square image"
        Ci = C // (r * r)
        Hr, Wr = H * r, W * r
        Ms = Hr * Wr

        # changeshape + PixelShuffle(r), fused into ONE layout pass, emitted
        # directly channel-major with pixels contiguous (lane-dense):
        #   x_cm[b, c, (h*r+i)*Wr + (w*r+j)] = x_tokens[b, h*W + w, c*r^2 + i*r + j]
        x6 = x_tokens.reshape(B, H, W, Ci, r, r)
        x_cm = jnp.transpose(x6, (0, 3, 1, 4, 2, 5)).reshape(B, Ci, Ms)

        out = shuffle_conv1x1(x_cm, self.w)          # (B, 3, Ms) channel-major
        fake = out.reshape(B, 3, Hr, Wr)             # pure reshape, no transpose

        # changeshape3(changeshape(x)) is an identity round-trip on the tokens.
        # TODO(synk): exact changeshape3 source not available in the snippet;
        # assumed to be the token-space inverse of changeshape.
        return x_tokens, fake


# -----------------------------------------------------------------------------
# Demo / correctness check
# -----------------------------------------------------------------------------
if __name__ == "__main__":
    B, H, W, dim, r = 2, 8, 8, 16, 2
    x = jax.random.normal(jax.random.PRNGKey(0), (B, H * W, dim), jnp.float32)

    mod = PixelShufflePallas(dim, up_scale=r, bias=False)
    x_out, fake = mod(x)
    jax.block_until_ready((x_out, fake))

    # pure-JAX reference: changeshape -> nn.PixelShuffle -> 1x1 conv
    Ci = dim // (r * r)
    x_img = jnp.transpose(x, (0, 2, 1)).reshape(B, dim, H, W)
    up_ref = x_img.reshape(B, Ci, r, r, H, W)
    up_ref = jnp.transpose(up_ref, (0, 1, 4, 2, 5, 3)).reshape(B, Ci, H * r, W * r)
    fake_ref = jnp.einsum("bchw,oc->bohw", up_ref, mod.w)

    assert x_out.shape == (B, H * W, dim)
    assert fake.shape == (B, 3, H * r, W * r)
    assert jnp.allclose(x_out, x)
    assert jnp.allclose(fake, fake_ref, atol=1e-5, rtol=1e-5)

    print("KERNEL_OK")
</pallas_src>

<mosaic_0001>
module attributes {stable_mosaic.version = 11 : i64} {
  func.func @_shuffle_conv1x1_kernel(%arg0: i32, %arg1: i32, %arg2: memref<1x4x2x128xf32, #tpu.memory_space<vmem>>, %arg3: memref<3x4xf32, #tpu.memory_space<smem>>, %arg4: memref<1x3x2x128xf32, #tpu.memory_space<vmem>>) attributes {dimension_semantics = [#tpu.dimension_semantics<parallel>, #tpu.dimension_semantics<parallel>], iteration_bounds = array<i64: 2, 1>, scalar_prefetch = 0 : i64, scratch_operands = 0 : i64, tpu.core_type = #tpu.core_type<tc>, window_params = [{transform_indices = @transform_0, window_bounds = array<i64: 1, 4, 2, 128>}, {transform_indices = @transform_1, window_bounds = array<i64: 3, 4>}, {transform_indices = @transform_2, window_bounds = array<i64: 1, 3, 2, 128>}]} {
    %c0 = arith.constant 0 : index
    %c0_0 = arith.constant 0 : index
    %c0_1 = arith.constant 0 : index
    %c0_2 = arith.constant 0 : index
    %0 = vector.load %arg2[%c0, %c0_0, %c0_1, %c0_2] : memref<1x4x2x128xf32, #tpu.memory_space<vmem>>, vector<1x1x2x128xf32>
    %1 = vector.shape_cast %0 : vector<1x1x2x128xf32> to vector<2x128xf32>
    %c0_3 = arith.constant 0 : index
    %c1 = arith.constant 1 : index
    %c0_4 = arith.constant 0 : index
    %c0_5 = arith.constant 0 : index
    %2 = vector.load %arg2[%c0_3, %c1, %c0_4, %c0_5] : memref<1x4x2x128xf32, #tpu.memory_space<vmem>>, vector<1x1x2x128xf32>
    %3 = vector.shape_cast %2 : vector<1x1x2x128xf32> to vector<2x128xf32>
    %c0_6 = arith.constant 0 : index
    %c2 = arith.constant 2 : index
    %c0_7 = arith.constant 0 : index
    %c0_8 = arith.constant 0 : index
    %4 = vector.load %arg2[%c0_6, %c2, %c0_7, %c0_8] : memref<1x4x2x128xf32, #tpu.memory_space<vmem>>, vector<1x1x2x128xf32>
    %5 = vector.shape_cast %4 : vector<1x1x2x128xf32> to vector<2x128xf32>
    %c0_9 = arith.constant 0 : index
    %c3 = arith.constant 3 : index
    %c0_10 = arith.constant 0 : index
    %c0_11 = arith.constant 0 : index
    %6 = vector.load %arg2[%c0_9, %c3, %c0_10, %c0_11] : memref<1x4x2x128xf32, #tpu.memory_space<vmem>>, vector<1x1x2x128xf32>
    %7 = vector.shape_cast %6 : vector<1x1x2x128xf32> to vector<2x128xf32>
    %c0_12 = arith.constant 0 : index
    %c0_13 = arith.constant 0 : index
    %8 = memref.load %arg3[%c0_12, %c0_13] : memref<3x4xf32, #tpu.memory_space<smem>>
    %9 = vector.broadcast %8 : f32 to vector<2x128xf32>
    %10 = arith.mulf %1, %9 : vector<2x128xf32>
    %c0_14 = arith.constant 0 : index
    %c1_15 = arith.constant 1 : index
    %11 = memref.load %arg3[%c0_14, %c1_15] : memref<3x4xf32, #tpu.memory_space<smem>>
    %12 = vector.broadcast %11 : f32 to vector<2x128xf32>
    %13 = arith.mulf %3, %12 : vector<2x128xf32>
    %14 = arith.addf %10, %13 : vector<2x128xf32>
    %c0_16 = arith.constant 0 : index
    %c2_17 = arith.constant 2 : index
    %15 = memref.load %arg3[%c0_16, %c2_17] : memref<3x4xf32, #tpu.memory_space<smem>>
    %16 = vector.broadcast %15 : f32 to vector<2x128xf32>
    %17 = arith.mulf %5, %16 : vector<2x128xf32>
    %18 = arith.addf %14, %17 : vector<2x128xf32>
    %c0_18 = arith.constant 0 : index
    %c3_19 = arith.constant 3 : index
    %19 = memref.load %arg3[%c0_18, %c3_19] : memref<3x4xf32, #tpu.memory_space<smem>>
    %20 = vector.broadcast %19 : f32 to vector<2x128xf32>
    %21 = arith.mulf %7, %20 : vector<2x128xf32>
    %22 = arith.addf %18, %21 : vector<2x128xf32>
    %c0_20 = arith.constant 0 : index
    %c0_21 = arith.constant 0 : index
    %c0_22 = arith.constant 0 : index
    %c0_23 = arith.constant 0 : index
    %23 = vector.load %arg4[%c0_20, %c0_21, %c0_22, %c0_23] : memref<1x3x2x128xf32, #tpu.memory_space<vmem>>, vector<1x1x2x128xf32>
    %24 = vector.shape_cast %23 : vector<1x1x2x128xf32> to vector<2x128xf32>
    %25 = vector.shape_cast %22 : vector<2x128xf32> to vector<1x1x2x128xf32>
    tpu.vector_store %arg4[%c0_20, %c0_21, %c0_22, %c0_23], %25 {strides = array<i32>} : memref<1x3x2x128xf32, #tpu.memory_space<vmem>>, vector<1x1x2x128xf32>,
    %c1_24 = arith.constant 1 : index
    %c0_25 = arith.constant 0 : index
    %26 = memref.load %arg3[%c1_24, %c0_25] : memref<3x4xf32, #tpu.memory_space<smem>>
    %27 = vector.broadcast %26 : f32 to vector<2x128xf32>
    %28 = arith.mulf %1, %27 : vector<2x128xf32>
    %c1_26 = arith.constant 1 : index
    %c1_27 = arith.constant 1 : index
    %29 = memref.load %arg3[%c1_26, %c1_27] : memref<3x4xf32, #tpu.memory_space<smem>>
    %30 = vector.broadcast %29 : f32 to vector<2x128xf32>
    %31 = arith.mulf %3, %30 : vector<2x128xf32>
    %32 = arith.addf %28, %31 : vector<2x128xf32>
    %c1_28 = arith.constant 1 : index
    %c2_29 = arith.constant 2 : index
    %33 = memref.load %arg3[%c1_28, %c2_29] : memref<3x4xf32, #tpu.memory_space<smem>>
    %34 = vector.broadcast %33 : f32 to vector<2x128xf32>
    %35 = arith.mulf %5, %34 : vector<2x128xf32>
    %36 = arith.addf %32, %35 : vector<2x128xf32>
    %c1_30 = arith.constant 1 : index
    %c3_31 = arith.constant 3 : index
    %37 = memref.load %arg3[%c1_30, %c3_31] : memref<3x4xf32, #tpu.memory_space<smem>>
    %38 = vector.broadcast %37 : f32 to vector<2x128xf32>
    %39 = arith.mulf %7, %38 : vector<2x128xf32>
    %40 = arith.addf %36, %39 : vector<2x128xf32>
    %c0_32 = arith.constant 0 : index
    %c1_33 = arith.constant 1 : index
    %c0_34 = arith.constant 0 : index
    %c0_35 = arith.constant 0 : index
    %41 = vector.load %arg4[%c0_32, %c1_33, %c0_34, %c0_35] : memref<1x3x2x128xf32, #tpu.memory_space<vmem>>, vector<1x1x2x128xf32>
    %42 = vector.shape_cast %41 : vector<1x1x2x128xf32> to vector<2x128xf32>
    %43 = vector.shape_cast %40 : vector<2x128xf32> to vector<1x1x2x128xf32>
    tpu.vector_store %arg4[%c0_32, %c1_33, %c0_34, %c0_35], %43 {strides = array<i32>} : memref<1x3x2x128xf32, #tpu.memory_space<vmem>>, vector<1x1x2x128xf32>,
    %c2_36 = arith.constant 2 : index
    %c0_37 = arith.constant 0 : index
    %44 = memref.load %arg3[%c2_36, %c0_37] : memref<3x4xf32, #tpu.memory_space<smem>>
    %45 = vector.broadcast %44 : f32 to vector<2x128xf32>
    %46 = arith.mulf %1, %45 : vector<2x128xf32>
    %c2_38 = arith.constant 2 : index
    %c1_39 = arith.constant 1 : index
    %47 = memref.load %arg3[%c2_38, %c1_39] : memref<3x4xf32, #tpu.memory_space<smem>>
    %48 = vector.broadcast %47 : f32 to vector<2x128xf32>
    %49 = arith.mulf %3, %48 : vector<2x128xf32>
    %50 = arith.addf %46, %49 : vector<2x128xf32>
    %c2_40 = arith.constant 2 : index
    %c2_41 = arith.constant 2 : index
    %51 = memref.load %arg3[%c2_40, %c2_41] : memref<3x4xf32, #tpu.memory_space<smem>>
    %52 = vector.broadcast %51 : f32 to vector<2x128xf32>
    %53 = arith.mulf %5, %52 : vector<2x128xf32>
    %54 = arith.addf %50, %53 : vector<2x128xf32>
    %c2_42 = arith.constant 2 : index
    %c3_43 = arith.constant 3 : index
    %55 = memref.load %arg3[%c2_42, %c3_43] : memref<3x4xf32, #tpu.memory_space<smem>>
    %56 = vector.broadcast %55 : f32 to vector<2x128xf32>
    %57 = arith.mulf %7, %56 : vector<2x128xf32>
    %58 = arith.addf %54, %57 : vector<2x128xf32>
    %c0_44 = arith.constant 0 : index
    %c2_45 = arith.constant 2 : index
    %c0_46 = arith.constant 0 : index
    %c0_47 = arith.constant 0 : index
    %59 = vector.load %arg4[%c0_44, %c2_45, %c0_46, %c0_47] : memref<1x3x2x128xf32, #tpu.memory_space<vmem>>, vector<1x1x2x128xf32>
    %60 = vector.shape_cast %59 : vector<1x1x2x128xf32> to vector<2x128xf32>
    %61 = vector.shape_cast %58 : vector<2x128xf32> to vector<1x1x2x128xf32>
    tpu.vector_store %arg4[%c0_44, %c2_45, %c0_46, %c0_47], %61 {strides = array<i32>} : memref<1x3x2x128xf32, #tpu.memory_space<vmem>>, vector<1x1x2x128xf32>,
    return
  }
  func.func @transform_0(%arg0: i32, %arg1: i32) -> (i32, i32, i32, i32) {
    %c0_i32 = arith.constant 0 : i32
    %c0_i32_0 = arith.constant 0 : i32
    %c0_i32_1 = arith.constant 0 : i32
    return %arg0, %c0_i32, %arg1, %c0_i32_0 : i32, i32, i32, i32
  }
  func.func @transform_1(%arg0: i32, %arg1: i32) -> (i32, i32) {
    %c0_i32 = arith.constant 0 : i32
    %c0_i32_0 = arith.constant 0 : i32
    %c0_i32_1 = arith.constant 0 : i32
    return %c0_i32, %c0_i32_0 : i32, i32
  }
  func.func @transform_2(%arg0: i32, %arg1: i32) -> (i32, i32, i32, i32) {
    %c0_i32 = arith.constant 0 : i32
    %c0_i32_0 = arith.constant 0 : i32
    %c0_i32_1 = arith.constant 0 : i32
    return %arg0, %c0_i32, %arg1, %c0_i32_0 : i32, i32, i32, i32
  }
}

</mosaic_0001>

<llo_original>
// kernel: tpu_custom_call.1
$region0: #{tpu_custom_call.1}
  #allocation0 [shape = 'u32[]', space=smem, size = 0x4, offset = 0x4, fixed_abs, tag = 'smem constant byte address 0x4 - core index']
  #allocation1 [shape = 'u32[144,128]{1,0:T(1,128)}', space=vmem, size = 0x12000, scoped, tag = 'internal scratch']
  %s0 = inlined_call_operand.hbm [shape: f32[2,4,2,128], index: 0, kind: input, shape index: {}]
  %s1 = inlined_call_operand.hbm [shape: f32[3,4], index: 1, kind: input, shape index: {}]
  %s2 = inlined_call_operand.hbm [shape: f32[2,3,2,128], index: 2, kind: output, shape index: {}]
  %s3 = sld [smem:[#allocation0]]
  $region49: #{tpu_custom_call.1} parent=0
    _
  %s5 = ssub.s32 1, %s3
  %s6 = scalar_select 0, %s5, %s3
  $region1: #{tpu_custom_call.1} parent=0
    #allocation2 [shape = 'u8[8192]{0}', space=vmem, size = 0x2000, scoped, tag = 'input window, operand 0']
    #allocation3 [shape = 's32[2]{0}', space=sflag, size = 0x8, scoped, tag = 'scoped memory for tpu_custom_call.1']
    #allocation4 [shape = 's32[2]{0}', space=sflag, size = 0x8, scoped, tag = 'scoped memory for tpu_custom_call.1']
    #allocation5 [shape = 's32[2]{0}', space=sflag, size = 0x8, scoped, tag = 'scoped memory for tpu_custom_call.1']
    #allocation6 [shape = 'u8[2048]{0}', space=smem, size = 0x800, scoped, tag = 'input window, operand 1, single buffered']
    #allocation7 [shape = 'u8[6144]{0}', space=vmem, size = 0x1800, scoped, tag = 'output window, operand 0']
    %7 = vsyncpa [#allocation3], 0
    %s8 = scalar_lea.sflag [#allocation3], 1
    %9 = vsyncpa %s8, 0
    %10 = vsyncpa [#allocation5], 0
    %11 = vsyncpa [#allocation4], 0
    %s12 = scalar_lea.sflag [#allocation4], 1
    %13 = vsyncpa %s12, 0
    loop: start=0, step=1, limit=4
    $region2: #{tpu_custom_call.1} parent=1 // loop_pre_header
      _
    $region3: #{tpu_custom_call.1} parent=1 // loop_header
      %s15 = sphi 0, %s19
      %p16 = scmp.ge.s32.totalorder %s15, 4
      %s22 = sphi 0, %s34
      %s23 = sphi 0, %s30
      %s24 = sphi 0, %s22
      %s25 = sphi 0, %s23
      %s26 = sphi 0, %s24
      %s27 = sphi 0, %s25
      %s39 = sphi 0, %s41
      %s42 = sphi 0, %s39
      %s43 = sphi 0, %s42
      %s59 = sphi 0, %s43
      %s63 = sphi 0, %s63
      %s65 = sphi 0, %s63
      %s66 = sphi 0, %s65
      %s80 = sphi 0, %s66
      %s88 = sphi 0, %s90
      %s91 = sphi 0, %s88
      %s92 = sphi 0, %s91
      %s108 = sphi 0, %s92
    $region4: #{tpu_custom_call.1} parent=1 // loop_header_branch
      %18 = sbr.rel (%p16) target = $region8
    $region5: #{tpu_custom_call.1} parent=1 // loop_body
      %s20 = ssub.s32 %s15, 1
      %s21 = ssub.s32 %s15, 2
      %s28 = sadd.s32 1, %s23
      %p29 = scmp.ge.s32.totalorder %s28, 1
      %s30 = scalar_select %p29, 0, %s28
      %s31 = sadd.s32 1, %s22
      %s32 = scalar_select %p29, %s31, %s22
      %p33 = scmp.ge.s32.totalorder %s32, 2
      %s34 = scalar_select %p33, 0, %s32
      %s35 = ssub.s32 %s22, %s34
      %s36 = ssub.s32 %s23, %s30
      %s37 = sor.u32 %s35, %s36
      %p38 = scmp.eq.s32.totalorder %s37, 0
      %s40 = sadd.s32 %s39, 1
      %s41 = scalar_select %p38, %s39, %s40
      %p44 = pneg %p38
      %p45 = scmp.eq.s32.totalorder %s15, 1
      %p46 = por %p44, %p45
      %p47 = scmp.ne.s32.totalorder %s39, %s42
      %p48 = scmp.eq.s32.totalorder %s15, 0
      %p49 = por %p47, %p48
      %p50 = scmp.ne.s32.totalorder %s39, %s42
      %p51 = scmp.eq.s32.totalorder %s20, 1
      %p52 = por %p50, %p51
      %p53 = scmp.ne.s32.totalorder %s42, %s43
      %p54 = scmp.eq.s32.totalorder %s20, 0
      %p55 = por %p53, %p54
      %p56 = scmp.ne.s32.totalorder %s42, %s43
      %p57 = scmp.eq.s32.totalorder %s21, 1
      %p58 = por %p56, %p57
      %p60 = scmp.ne.s32.totalorder %s43, %s59
      %p61 = scmp.eq.s32.totalorder %s21, 0
      %p62 = por %p60, %p61
      %s64 = sadd.s32 %s63, 1
      %p67 = scmp.eq.s32.totalorder %s15, 1
      %p68 = scmp.ne.s32.totalorder %s63, %s65
      %p69 = scmp.eq.s32.totalorder %s15, 0
      %p70 = por %p68, %p69
      %p71 = scmp.ne.s32.totalorder %s63, %s65
      %p72 = scmp.eq.s32.totalorder %s20, 1
      %p73 = por %p71, %p72
      %p74 = scmp.ne.s32.totalorder %s65, %s66
      %p75 = scmp.eq.s32.totalorder %s20, 0
      %p76 = por %p74, %p75
      %p77 = scmp.ne.s32.totalorder %s65, %s66
      %p78 = scmp.eq.s32.totalorder %s21, 1
      %p79 = por %p77, %p78
      %p81 = scmp.ne.s32.totalorder %s66, %s80
      %p82 = scmp.eq.s32.totalorder %s21, 0
      %p83 = por %p81, %p82
      %s84 = ssub.s32 %s22, %s34
      %s85 = ssub.s32 %s23, %s30
      %s86 = sor.u32 %s84, %s85
      %p87 = scmp.eq.s32.totalorder %s86, 0
      %s89 = sadd.s32 %s88, 1
      %s90 = scalar_select %p87, %s88, %s89
      %p93 = pneg %p87
      %p94 = scmp.eq.s32.totalorder %s15, 1
      %p95 = por %p93, %p94
      %p96 = scmp.ne.s32.totalorder %s88, %s91
      %p97 = scmp.eq.s32.totalorder %s15, 0
      %p98 = por %p96, %p97
      %p99 = scmp.ne.s32.totalorder %s88, %s91
      %p100 = scmp.eq.s32.totalorder %s20, 1
      %p101 = por %p99, %p100
      %p102 = scmp.ne.s32.totalorder %s91, %s92
      %p103 = scmp.eq.s32.totalorder %s20, 0
      %p104 = por %p102, %p103
      %p105 = scmp.ne.s32.totalorder %s91, %s92
      %p106 = scmp.eq.s32.totalorder %s21, 1
      %p107 = por %p105, %p106
      %p109 = scmp.ne.s32.totalorder %s92, %s108
      %p110 = scmp.eq.s32.totalorder %s21, 0
      %p111 = por %p109, %p110
      %p112 = scmp.le.s32.totalorder 1, %s15
      %p113 = scmp.lt.s32.totalorder %s15, 3
      %p114 = pnand %p112, %p113
      %p115 = pneg %p114
      // Predicated region
      $region9: #{tpu_custom_call.1} parent=5 // pred_check
        _
      $region10: #{tpu_custom_call.1} parent=5 // pred_check_branch
        %117 = sbr.rel (%p114) target = $region12
      $region11: #{tpu_custom_call.1} parent=5 // pred_region
        %s118 = ssub.s32 %s15, 1
        // Predicated region
        $region13: #{tpu_custom_call.1} parent=11 // pred_check
          %p119 = pneg %p76
        $region14: #{tpu_custom_call.1} parent=11 // pred_check_branch
          %121 = sbr.rel (%p119) target = $region16
        $region15: #{tpu_custom_call.1} parent=11 // pred_region
          %s123 = ssub.s32 64, 64
          %124 = vsyncadd [#allocation5], %s123
          %127 = dma.hbm_to_smem %s1, 64, [#allocation6], [#allocation5]
        $region16: #{tpu_custom_call.1} parent=11 // pred_fallthru
          _
      $region12: #{tpu_custom_call.1} parent=5 // pred_fallthru
        _
      %p128 = scmp.lt.s32.totalorder %s15, 2
      // Predicated region
      $region17: #{tpu_custom_call.1} parent=5 // pred_check
        %p129 = pneg %p128
      $region18: #{tpu_custom_call.1} parent=5 // pred_check_branch
        %131 = sbr.rel (%p129) target = $region20
      $region19: #{tpu_custom_call.1} parent=5 // pred_region
        // Predicated region
        $region21: #{tpu_custom_call.1} parent=19 // pred_check
          %p132 = pneg %p49
        $region22: #{tpu_custom_call.1} parent=19 // pred_check_branch
          %134 = sbr.rel (%p132) target = $region24
        $region23: #{tpu_custom_call.1} parent=19 // pred_region
          %s135 = sand.u32 %s39, 1
          %s136 = scalar_lea.sflag [#allocation3], %s135
          %s137 = sand.u32 %s39, 1
          %s138 = smul.addr %s137, 8
          %s139 = scalar_lea.vmem [#allocation2], %s138
          %s141 = ssub.s32 128, 128
          %142 = vsyncadd %s136, %s141
          %s143 = smul.addr %s22, 4
          %s144 = sadd.s32 %s23, %s143
          %s145 = smul.addr %s144, 32
          %s146 = scalar_lea.hbm %s0, %s145
          %s147 = sshll.u32 %s139, 4
          %s148 = int_to_ptr.vmem [resolvable:$true] %s147
          %153 = dma.hbm_to_vmem [thread:$0]  %s146, 128, %s148, %s136, 32, 32, 2
        $region24: #{tpu_custom_call.1} parent=19 // pred_fallthru
          _
      $region20: #{tpu_custom_call.1} parent=5 // pred_fallthru
        _
      %p154 = scmp.le.s32.totalorder 1, %s15
      %p155 = scmp.lt.s32.totalorder %s15, 3
      %p156 = pnand %p154, %p155
      %p157 = pneg %p156
      // Predicated region
      $region25: #{tpu_custom_call.1} parent=5 // pred_check
        _
      $region26: #{tpu_custom_call.1} parent=5 // pred_check_branch
        %159 = sbr.rel (%p156) target = $region28
      $region27: #{tpu_custom_call.1} parent=5 // pred_region
        %s160 = ssub.s32 %s15, 1
        %s161 = sand.u32 %s42, 1
        %s162 = scalar_lea.sflag [#allocation3], %s161
        %s163 = sand.u32 %s42, 1
        %s164 = smul.addr %s163, 8
        %s165 = scalar_lea.vmem [#allocation2], %s164
        // Predicated region
        $region29: #{tpu_custom_call.1} parent=27 // pred_check
          %p166 = pneg %p55
        $region30: #{tpu_custom_call.1} parent=27 // pred_check_branch
          %168 = sbr.rel (%p166) target = $region32
        $region31: #{tpu_custom_call.1} parent=27 // pred_region
          %169 = dma.done %s162, 128
        $region32: #{tpu_custom_call.1} parent=27 // pred_fallthru
          _
        // Predicated region
        $region33: #{tpu_custom_call.1} parent=27 // pred_check
          %p170 = pneg %p76
        $region34: #{tpu_custom_call.1} parent=27 // pred_check_branch
          %172 = sbr.rel (%p170) target = $region36
        $region35: #{tpu_custom_call.1} parent=27 // pred_region
          %173 = dma.done [#allocation5], 64
        $region36: #{tpu_custom_call.1} parent=27 // pred_fallthru
          _
        %174 = sfence
        %s175 = sand.u32 %s42, 1
        %s176 = scalar_lea.sflag [#allocation3], %s175
        %s177 = sand.u32 %s42, 1
        %s178 = smul.addr %s177, 8
        %s179 = scalar_lea.vmem [#allocation2], %s178
        %p180 = pneg %p55
        %p181 = pneg %p52
        %p182 = pneg %p76
        %p183 = pneg %p73
        %p184 = pneg %p104
        %p185 = pneg %p101
        %s186 = sand.u32 %s91, 1
        %s187 = scalar_lea.sflag [#allocation4], %s186
        %s188 = sand.u32 %s91, 1
        %s189 = smul.addr %s188, 6
        %s190 = scalar_lea.vmem [#allocation7], %s189
        %v191 = vld [vmem:[%s165] sm:$0x3]
        %s192 = scalar_lea.vmem %s165, 2 [#allocation2]
        %v193 = vld [vmem:[%s192] sm:$0x3]
        %s194 = scalar_lea.vmem %s165, 4 [#allocation2]
        %v195 = vld [vmem:[%s194] sm:$0x3]
        %s196 = scalar_lea.vmem %s165, 6 [#allocation2]
        %v197 = vld [vmem:[%s196] sm:$0x3]
        %s198 = sld [smem:[#allocation6]]
        %v199 = vstv %s198
        %v200 = vmul.f32 %v191, %v199
        %s201 = sld [smem:[#allocation6 + $0x1]]
        %v202 = vstv %s201
        %v203 = vmul.f32 %v193, %v202
        %v204 = vadd.f32 %v200, %v203
        %s205 = sld [smem:[#allocation6 + $0x2]]
        %v206 = vstv %s205
        %v207 = vmul.f32 %v195, %v206
        %v208 = vadd.f32 %v204, %v207
        %s209 = sld [smem:[#allocation6 + $0x3]]
        %v210 = vstv %s209
        %v211 = vmul.f32 %v197, %v210
        %v212 = vadd.f32 %v208, %v211
        %213 = vst [vmem:[%s190] sm:$0x3] %v212
        %s214 = sld [smem:[#allocation6 + $0x80]]
        %v215 = vstv %s214
        %v216 = vmul.f32 %v191, %v215
        %s217 = sld [smem:[#allocation6 + $0x81]]
        %v218 = vstv %s217
        %v219 = vmul.f32 %v193, %v218
        %v220 = vadd.f32 %v216, %v219
        %s221 = sld [smem:[#allocation6 + $0x82]]
        %v222 = vstv %s221
        %v223 = vmul.f32 %v195, %v222
        %v224 = vadd.f32 %v220, %v223
        %s225 = sld [smem:[#allocation6 + $0x83]]
        %v226 = vstv %s225
        %v227 = vmul.f32 %v197, %v226
        %v228 = vadd.f32 %v224, %v227
        %s229 = scalar_lea.vmem %s190, 2 [#allocation7]
        %230 = vst [vmem:[%s229] sm:$0x3] %v228
        %s231 = sld [smem:[#allocation6 + $0x100]]
        %v232 = vstv %s231
        %v233 = vmul.f32 %v191, %v232
        %s234 = sld [smem:[#allocation6 + $0x101]]
        %v235 = vstv %s234
        %v236 = vmul.f32 %v193, %v235
        %v237 = vadd.f32 %v233, %v236
        %s238 = sld [smem:[#allocation6 + $0x102]]
        %v239 = vstv %s238
        %v240 = vmul.f32 %v195, %v239
        %v241 = vadd.f32 %v237, %v240
        %s242 = sld [smem:[#allocation6 + $0x103]]
        %v243 = vstv %s242
        %v244 = vmul.f32 %v197, %v243
        %v245 = vadd.f32 %v241, %v244
        %s246 = scalar_lea.vmem %s190, 4 [#allocation7]
        %247 = vst [vmem:[%s246] sm:$0x3] %v245
        %s248 = sand.u32 %s91, 1
        %s249 = scalar_lea.sflag [#allocation4], %s248
        %s250 = sand.u32 %s91, 1
        %s251 = smul.addr %s250, 6
        %s252 = scalar_lea.vmem [#allocation7], %s251
        // Predicated region
        $region37: #{tpu_custom_call.1} parent=27 // pred_check
          %p253 = pneg %p101
        $region38: #{tpu_custom_call.1} parent=27 // pred_check_branch
          %255 = sbr.rel (%p253) target = $region40
        $region39: #{tpu_custom_call.1} parent=27 // pred_region
          %s257 = ssub.s32 96, 96
          %258 = vsyncadd %s249, %s257
          %s259 = smul.addr %s24, 3
          %s260 = sadd.s32 %s25, %s259
          %s261 = smul.addr %s260, 32
          %s262 = scalar_lea.hbm %s2, %s261
          %s263 = sshll.u32 %s252, 4
          %s264 = int_to_ptr.vmem [resolvable:$true] %s263
          %269 = dma.vmem_to_hbm [thread:$0]  %s264, 96, %s262, %s249, 32, 32, 2
        $region40: #{tpu_custom_call.1} parent=27 // pred_fallthru
          _
      $region28: #{tpu_custom_call.1} parent=5 // pred_fallthru
        _
      %p270 = scmp.le.s32.totalorder 2, %s15
      // Predicated region
      $region41: #{tpu_custom_call.1} parent=5 // pred_check
        %p271 = pneg %p270
      $region42: #{tpu_custom_call.1} parent=5 // pred_check_branch
        %273 = sbr.rel (%p271) target = $region44
      $region43: #{tpu_custom_call.1} parent=5 // pred_region
        %s274 = ssub.s32 %s15, 2
        // Predicated region
        $region45: #{tpu_custom_call.1} parent=43 // pred_check
          %p275 = pneg %p107
        $region46: #{tpu_custom_call.1} parent=43 // pred_check_branch
          %277 = sbr.rel (%p275) target = $region48
        $region47: #{tpu_custom_call.1} parent=43 // pred_region
          %s278 = sand.u32 %s92, 1
          %s279 = scalar_lea.sflag [#allocation4], %s278
          %s280 = sand.u32 %s92, 1
          %s281 = smul.addr %s280, 6
          %s282 = scalar_lea.vmem [#allocation7], %s281
          %283 = dma.done %s279, 96
        $region48: #{tpu_custom_call.1} parent=43 // pred_fallthru
          _
      $region44: #{tpu_custom_call.1} parent=5 // pred_fallthru
        _
    $region6: #{tpu_custom_call.1} parent=1 // loop_footer
      %s19 = sadd.s32 1, %s15
    $region7: #{tpu_custom_call.1} parent=1 // loop_footer_branch
      %14 = sbr.rel target = $region3
    $region8: #{tpu_custom_call.1} parent=1 // loop_exit
      _
    %284 = vsyncpa [#allocation3], 1
    %s285 = scalar_lea.sflag [#allocation3], 1
    %286 = vsyncpa %s285, 1
    %287 = vsyncpa [#allocation4], 1
    %s288 = scalar_lea.sflag [#allocation4], 1
    %289 = vsyncpa %s288, 1
    %290 = vsyncpa [#allocation5], 1
    %s291 = scalar_lea.sflag [#allocation5], 1
    %292 = vsyncpa %s291, 1

</llo_original>
